<compile_context>
chip_gen: v7x
topology: tpu7x:2x2x1
jax: 0.10.0
libtpu: 0.0.40
codegen_flags: <defaults>
</compile_context>

<pallas_src>
import functools

import numpy as np
import jax
import jax.numpy as jnp
from jax.experimental import pallas as pl
from jax.experimental.pallas import tpu as pltpu


_ALIGN = 16          # row alignment inside the packed parameter slab (bf16 sublane tile)
_LANES = 128         # lane width of the slab and of the padded output
_HIDDEN = (64, 32, 16)


def _round_up(n, m):
    return ((n + m - 1) // m) * m


def _slab_offsets(dim_input):
    """Row offsets of W1/W2/W3/W4/biases inside the packed slab (all 16-aligned)."""
    in_pad = _round_up(dim_input, _ALIGN)
    w1 = 0
    w2 = in_pad                      # 64 rows
    w3 = w2 + _HIDDEN[0]             # 32 rows
    w4 = w3 + _HIDDEN[1]             # 16 rows
    b = w4 + _HIDDEN[2]              # 16-row bias stripe, rows 0..3 = b1..b4
    rows = b + _ALIGN
    return in_pad, (w1, w2, w3, w4, b), rows


def _make_qnet_kernel(d_in, offs):
    """Kernel factory; closes over static row offsets into the parameter slab."""
    w1o, w2o, w3o, w4o, bo = offs
    h1, h2, h3 = _HIDDEN

    def kernel(x_ref, p_ref, o_ref):
        cdt = p_ref.dtype                                   # bf16 MXU input dtype
        x = x_ref[...].astype(cdt)                          # (TB, d_in) bf16

        # One aligned 16-row load of the bias stripe (rows 0..3 live).
        b = p_ref[bo:bo + _ALIGN, :].astype(jnp.float32)    # (16, 128)

        # fc_1 + ReLU  (K = d_in, live lanes = 64)
        h = jnp.dot(x, p_ref[w1o:w1o + d_in, :],
                    preferred_element_type=jnp.float32)     # (TB, 128) f32
        h = jnp.maximum(h[:, :h1] + b[0:1, :h1], 0.0).astype(cdt)   # (TB, 64)

        # fc_2 + ReLU  (K = 64, live lanes = 32)
        h = jnp.dot(h, p_ref[w2o:w2o + h1, :],
                    preferred_element_type=jnp.float32)
        h = jnp.maximum(h[:, :h2] + b[1:2, :h2], 0.0).astype(cdt)   # (TB, 32)

        # fc_3 + ReLU  (K = 32, live lanes = 16)
        h = jnp.dot(h, p_ref[w3o:w3o + h2, :],
                    preferred_element_type=jnp.float32)
        h = jnp.maximum(h[:, :h3] + b[2:3, :h3], 0.0).astype(cdt)   # (TB, 16)

        # logits (no ReLU); lane-dense bf16 store of the padded (TB, 128) slab.
        h = jnp.dot(h, p_ref[w4o:w4o + h3, :],
                    preferred_element_type=jnp.float32)
        o_ref[...] = (h + b[3:4, :]).astype(o_ref.dtype)

    return kernel


def pack_qnet_params(params, param_dtype=jnp.bfloat16):
    """Pack w1..w4 / b1..b4 into one zero-padded (in_pad + 128, 128) bf16 slab.

    Layout (row offsets, all multiples of 16):
      [0,        in_pad)      : W1 (dim_input, 64)     top-left, rest zero
      [in_pad,   +64)         : W2 (64, 32)
      [+64,      +96)         : W3 (32, 16)
      [+96,      +112)        : W4 (16, action_size)
      [+112,     +128)        : rows 0..3 = b1, b2, b3, b4

    Zero padding is exact: padded weight columns and bias lanes are 0, so the
    padded output lanes are exactly 0 before the wrapper slices them away.
    Pack once and reuse for inference; re-pack per step only when training.
    """
    dim_input, h1 = params["w1"].shape
    action_size = params["w4"].shape[1]
    assert h1 == _HIDDEN[0], "w1 must be (dim_input, 64)"
    assert params["w2"].shape == (_HIDDEN[0], _HIDDEN[1])
    assert params["w3"].shape == (_HIDDEN[1], _HIDDEN[2])
    assert params["w4"].shape[0] == _HIDDEN[2]
    assert action_size <= _LANES, "action_size must be <= 128 for this packing"

    in_pad, (w1o, w2o, w3o, w4o, bo), rows = _slab_offsets(dim_input)
    slab = jnp.zeros((rows, _LANES), param_dtype)
    for i, off in zip(range(1, 5), (w1o, w2o, w3o, w4o)):
        w = params[f"w{i}"].astype(param_dtype)
        slab = slab.at[off:off + w.shape[0], :w.shape[1]].set(w)
    for i in range(1, 5):
        bvec = params[f"b{i}"].reshape(-1).astype(param_dtype)
        slab = slab.at[bo + (i - 1), :bvec.shape[0]].set(bvec)
    return slab


@functools.partial(jax.jit,
                   static_argnames=("action_size", "tile_rows", "out_dtype"))
def qnet_forward_packed(x, slab, *, action_size, tile_rows=2048,
                        out_dtype=jnp.bfloat16):
    """x: (B, dim_input) f32/bf16.  slab: output of pack_qnet_params."""
    B, dim_input = x.shape
    in_pad, offs, rows = _slab_offsets(dim_input)
    assert slab.shape == (rows, _LANES), "slab was packed for a different dim_input"
    assert action_size <= _LANES

    # Row tile: big enough to amortize per-step overhead, small enough that the
    # grid has >= 2 steps for large B (so v7x megacore actually splits work).
    tile_rows = max(8, (tile_rows // 8) * 8)
    tb = min(tile_rows, _round_up(pl.cdiv(B, 2), _ALIGN))
    tb = max(8, min(tb, _round_up(B, 8)))
    if tb > B:
        tb = B                       # single full-batch tile (full array dim is legal)
    grid = (pl.cdiv(B, tb),)

    flops = 2 * B * (dim_input * 64 + 64 * 32 + 32 * 16 + 16 * action_size)
    bytes_accessed = (B * dim_input * x.dtype.itemsize
                      + B * _LANES * np.dtype(out_dtype).itemsize
                      + slab.size * slab.dtype.itemsize)

    out_pad = pl.pallas_call(
        _make_qnet_kernel(dim_input, offs),
        out_shape=jax.ShapeDtypeStruct((B, _LANES), out_dtype),
        grid=grid,
        in_specs=[
            # Raw activations, no wrapper pad/cast; full last dim (<128 is legal).
            pl.BlockSpec((tb, dim_input), lambda i: (i, 0)),
            # Packed parameters; constant index_map -> resident, one DMA.
            pl.BlockSpec((rows, _LANES), lambda i: (0, 0)),
        ],
        # Lane-dense bf16 output slab (unmasked vst); sliced in the wrapper.
        out_specs=pl.BlockSpec((tb, _LANES), lambda i: (i, 0)),
        compiler_params=pltpu.CompilerParams(
            dimension_semantics=("parallel",),     # megacore split on v7x
        ),
        cost_estimate=pl.CostEstimate(flops=flops, transcendentals=0,
                                      bytes_accessed=bytes_accessed),
    )(x, slab)

    return out_pad[:, :action_size]


def qnet_forward(x, params, *, tile_rows=2048, param_dtype=jnp.bfloat16,
                 out_dtype=jnp.bfloat16):
    """Convenience path (packs per call, fuses under jit) — use for training.
    For inference/serving, call pack_qnet_params once and use qnet_forward_packed."""
    slab = pack_qnet_params(params, param_dtype)
    return qnet_forward_packed(x, slab, action_size=params["w4"].shape[1],
                               tile_rows=tile_rows, out_dtype=out_dtype)


def init_qnet_params(key, dim_input, action_size):
    """Deterministic init mirroring nn.Linear; weights stored as (in, out)."""
    dims = [(dim_input, _HIDDEN[0]), (_HIDDEN[0], _HIDDEN[1]),
            (_HIDDEN[1], _HIDDEN[2]), (_HIDDEN[2], action_size)]
    params = {}
    for i, (fan_in, fan_out) in enumerate(dims, start=1):
        key, kw, kb = jax.random.split(key, 3)
        bound = 1.0 / float(np.sqrt(fan_in))
        params[f"w{i}"] = jax.random.uniform(
            kw, (fan_in, fan_out), jnp.float32, -bound, bound)
        params[f"b{i}"] = jax.random.uniform(
            kb, (1, fan_out), jnp.float32, -bound, bound)
    return params


def qnet_reference(x, params, param_dtype=jnp.bfloat16, out_dtype=jnp.bfloat16):
    """Plain-JAX reference mirroring the kernel's rounding points."""
    f32 = lambda a: a.astype(jnp.float32)
    h = f32(x.astype(param_dtype))
    for i in (1, 2, 3):
        w = f32(params[f"w{i}"].astype(param_dtype))
        b = f32(params[f"b{i}"].astype(param_dtype))
        h = f32(jnp.maximum(h @ w + b, 0.0).astype(param_dtype))
    w = f32(params["w4"].astype(param_dtype))
    b = f32(params["b4"].astype(param_dtype))
    return (h @ w + b).astype(out_dtype)


if __name__ == "__main__":
    dim_input = 8
    action_size = 4

    key = jax.random.PRNGKey(0)
    key, kx1, kx2 = jax.random.split(key, 3)
    params = init_qnet_params(key, dim_input, action_size)

    # Pack once, reuse across calls (hoisted out of the per-call path).
    slab = pack_qnet_params(params)

    # batch=2: tiny-batch / single-tile path; batch=37: multi-step grid with a
    # partial edge tile (exercises the cdiv remainder handling).
    for kx, batch in ((kx1, 2), (kx2, 37)):
        x = jax.random.normal(kx, (batch, dim_input), jnp.float32)
        out = jax.block_until_ready(
            qnet_forward_packed(x, slab, action_size=action_size))
        ref = qnet_reference(x, params)
        assert out.shape == (batch, action_size), out.shape
        assert jnp.allclose(out.astype(jnp.float32), ref.astype(jnp.float32),
                            atol=1e-2, rtol=1e-2), (out, ref)

    print("KERNEL_OK")
</pallas_src>

<mosaic_0001>
module attributes {stable_mosaic.version = 11 : i64} {
  func.func @kernel(%arg0: i32, %arg1: memref<2x8xf32, #tpu.memory_space<vmem>>, %arg2: memref<144x128xbf16, #tpu.memory_space<vmem>>, %arg3: memref<2x128xbf16, #tpu.memory_space<vmem>>) attributes {dimension_semantics = [#tpu.dimension_semantics<parallel>], iteration_bounds = array<i64: 1>, scalar_prefetch = 0 : i64, scratch_operands = 0 : i64, tpu.core_type = #tpu.core_type<tc>, window_params = [{transform_indices = @transform_0, window_bounds = array<i64: 2, 8>}, {pipeline_mode = #tpu.pipeline_mode<synchronous>, transform_indices = @transform_1, window_bounds = array<i64: 144, 128>}, {transform_indices = @transform_2, window_bounds = array<i64: 2, 128>}]} {
    %c0 = arith.constant 0 : index
    %c0_0 = arith.constant 0 : index
    %0 = vector.load %arg1[%c0, %c0_0] : memref<2x8xf32, #tpu.memory_space<vmem>>, vector<2x8xf32>
    %1 = arith.truncf %0 : vector<2x8xf32> to vector<2x8xbf16>
    %c128 = arith.constant 128 : index
    %c0_1 = arith.constant 0 : index
    %2 = vector.load %arg2[%c128, %c0_1] : memref<144x128xbf16, #tpu.memory_space<vmem>>, vector<16x128xbf16>
    %3 = arith.extf %2 : vector<16x128xbf16> to vector<16x128xf32>
    %c0_2 = arith.constant 0 : index
    %c0_3 = arith.constant 0 : index
    %4 = vector.load %arg2[%c0_2, %c0_3] : memref<144x128xbf16, #tpu.memory_space<vmem>>, vector<8x128xbf16>
    %cst = arith.constant dense<0.000000e+00> : vector<2x128xf32>
    %5 = tpu.matmul %1, %4, %cst {dimension_numbers = #tpu.dot_dimension_numbers<[1], [0], [0], [1], [0, 0, 1, 1], [], []>} : vector<2x8xbf16>, vector<8x128xbf16>, vector<2x128xf32> -> vector<2x128xf32>
    %6 = vector.extract_strided_slice %5 {offsets = [0, 0], sizes = [2, 64], strides = [1, 1]} : vector<2x128xf32> to vector<2x64xf32>
    %7 = vector.extract_strided_slice %3 {offsets = [0, 0], sizes = [1, 64], strides = [1, 1]} : vector<16x128xf32> to vector<1x64xf32>
    %8 = vector.broadcast %7 : vector<1x64xf32> to vector<2x64xf32>
    %9 = arith.addf %6, %8 : vector<2x64xf32>
    %cst_4 = arith.constant 0.000000e+00 : f32
    %10 = vector.broadcast %cst_4 : f32 to vector<2x64xf32>
    %11 = arith.maximumf %9, %10 : vector<2x64xf32>
    %12 = arith.truncf %11 : vector<2x64xf32> to vector<2x64xbf16>
    %c16 = arith.constant 16 : index
    %c0_5 = arith.constant 0 : index
    %13 = vector.load %arg2[%c16, %c0_5] : memref<144x128xbf16, #tpu.memory_space<vmem>>, vector<64x128xbf16>
    %cst_6 = arith.constant dense<0.000000e+00> : vector<2x128xf32>
    %14 = tpu.matmul %12, %13, %cst_6 {dimension_numbers = #tpu.dot_dimension_numbers<[1], [0], [0], [1], [0, 0, 1, 1], [], []>} : vector<2x64xbf16>, vector<64x128xbf16>, vector<2x128xf32> -> vector<2x128xf32>
    %15 = vector.extract_strided_slice %14 {offsets = [0, 0], sizes = [2, 32], strides = [1, 1]} : vector<2x128xf32> to vector<2x32xf32>
    %16 = vector.extract_strided_slice %3 {offsets = [1, 0], sizes = [1, 32], strides = [1, 1]} : vector<16x128xf32> to vector<1x32xf32>
    %17 = vector.broadcast %16 : vector<1x32xf32> to vector<2x32xf32>
    %18 = arith.addf %15, %17 : vector<2x32xf32>
    %cst_7 = arith.constant 0.000000e+00 : f32
    %19 = vector.broadcast %cst_7 : f32 to vector<2x32xf32>
    %20 = arith.maximumf %18, %19 : vector<2x32xf32>
    %21 = arith.truncf %20 : vector<2x32xf32> to vector<2x32xbf16>
    %c80 = arith.constant 80 : index
    %c0_8 = arith.constant 0 : index
    %22 = vector.load %arg2[%c80, %c0_8] : memref<144x128xbf16, #tpu.memory_space<vmem>>, vector<32x128xbf16>
    %cst_9 = arith.constant dense<0.000000e+00> : vector<2x128xf32>
    %23 = tpu.matmul %21, %22, %cst_9 {dimension_numbers = #tpu.dot_dimension_numbers<[1], [0], [0], [1], [0, 0, 1, 1], [], []>} : vector<2x32xbf16>, vector<32x128xbf16>, vector<2x128xf32> -> vector<2x128xf32>
    %24 = vector.extract_strided_slice %23 {offsets = [0, 0], sizes = [2, 16], strides = [1, 1]} : vector<2x128xf32> to vector<2x16xf32>
    %25 = vector.extract_strided_slice %3 {offsets = [2, 0], sizes = [1, 16], strides = [1, 1]} : vector<16x128xf32> to vector<1x16xf32>
    %26 = vector.broadcast %25 : vector<1x16xf32> to vector<2x16xf32>
    %27 = arith.addf %24, %26 : vector<2x16xf32>
    %cst_10 = arith.constant 0.000000e+00 : f32
    %28 = vector.broadcast %cst_10 : f32 to vector<2x16xf32>
    %29 = arith.maximumf %27, %28 : vector<2x16xf32>
    %30 = arith.truncf %29 : vector<2x16xf32> to vector<2x16xbf16>
    %c112 = arith.constant 112 : index
    %c0_11 = arith.constant 0 : index
    %31 = vector.load %arg2[%c112, %c0_11] : memref<144x128xbf16, #tpu.memory_space<vmem>>, vector<16x128xbf16>
    %cst_12 = arith.constant dense<0.000000e+00> : vector<2x128xf32>
    %32 = tpu.matmul %30, %31, %cst_12 {dimension_numbers = #tpu.dot_dimension_numbers<[1], [0], [0], [1], [0, 0, 1, 1], [], []>} : vector<2x16xbf16>, vector<16x128xbf16>, vector<2x128xf32> -> vector<2x128xf32>
    %33 = vector.extract_strided_slice %3 {offsets = [3, 0], sizes = [1, 128], strides = [1, 1]} : vector<16x128xf32> to vector<1x128xf32>
    %34 = vector.broadcast %33 : vector<1x128xf32> to vector<2x128xf32>
    %35 = arith.addf %32, %34 : vector<2x128xf32>
    %36 = arith.truncf %35 : vector<2x128xf32> to vector<2x128xbf16>
    %c0_13 = arith.constant 0 : index
    %c0_14 = arith.constant 0 : index
    %37 = vector.load %arg3[%c0_13, %c0_14] : memref<2x128xbf16, #tpu.memory_space<vmem>>, vector<2x128xbf16>
    tpu.vector_store %arg3[%c0_13, %c0_14], %36 {strides = array<i32>} : memref<2x128xbf16, #tpu.memory_space<vmem>>, vector<2x128xbf16>,
    return
  }
  func.func @transform_0(%arg0: i32) -> (i32, i32) {
    %c0_i32 = arith.constant 0 : i32
    %c0_i32_0 = arith.constant 0 : i32
    return %arg0, %c0_i32 : i32, i32
  }
  func.func @transform_1(%arg0: i32) -> (i32, i32) {
    %c0_i32 = arith.constant 0 : i32
    %c0_i32_0 = arith.constant 0 : i32
    %c0_i32_1 = arith.constant 0 : i32
    return %c0_i32, %c0_i32_0 : i32, i32
  }
  func.func @transform_2(%arg0: i32) -> (i32, i32) {
    %c0_i32 = arith.constant 0 : i32
    %c0_i32_0 = arith.constant 0 : i32
    return %arg0, %c0_i32 : i32, i32
  }
}

</mosaic_0001>

<llo_original>
// kernel: qnet_forward_packed.1
$region0: #{qnet_forward_packed.1}
  #allocation0 [shape = 'u32[]', space=smem, size = 0x4, offset = 0x4, fixed_abs, tag = 'smem constant byte address 0x4 - core index']
  #allocation1 [shape = 'u32[144,128]{1,0:T(1,128)}', space=vmem, size = 0x12000, scoped, tag = 'internal scratch']
  %s0 = inlined_call_operand.hbm [shape: f32[2,8], index: 0, kind: input, shape index: {}]
  %s1 = inlined_call_operand.hbm [shape: bf16[144,128], index: 1, kind: input, shape index: {}]
  %s2 = inlined_call_operand.hbm [shape: bf16[2,128], index: 2, kind: output, shape index: {}]
  %s3 = sld [smem:[#allocation0]]
  $region26: #{qnet_forward_packed.1} parent=0
    _
  %s5 = ssub.s32 1, %s3
  %s6 = scalar_select 0, %s5, %s3
  $region1: #{qnet_forward_packed.1} parent=0
    #allocation2 [shape = 'u8[1024]{0}', space=vmem, size = 0x400, scoped, tag = 'input window, operand 0, single buffered']
    #allocation3 [shape = 's32[1]{0}', space=sflag, size = 0x4, scoped, tag = 'scoped memory for qnet_forward_packed.1']
    #allocation4 [shape = 's32[1]{0}', space=sflag, size = 0x4, scoped, tag = 'scoped memory for qnet_forward_packed.1']
    #allocation5 [shape = 'u8[36864]{0}', space=vmem, size = 0x9000, scoped, tag = 'input window, operand 1, single buffered']
    #allocation6 [shape = 's32[1]{0}', space=sflag, size = 0x4, scoped, tag = 'scoped memory for qnet_forward_packed.1']
    #allocation7 [shape = 'u8[512]{0}', space=vmem, size = 0x400, scoped, tag = 'output window, operand 0, single buffered']
    %7 = vsyncpa [#allocation3], 0
    %8 = vsyncpa [#allocation6], 0
    %9 = vsyncpa [#allocation4], 0
    // Predicated region
    $region2: #{qnet_forward_packed.1} parent=1 // pred_check
      _
    $region3: #{qnet_forward_packed.1} parent=1 // pred_check_branch
      %11 = sbr.rel (0) target = $region5
    $region4: #{qnet_forward_packed.1} parent=1 // pred_region
      %s13 = ssub.s32 32, 32
      %14 = vsyncadd [#allocation3], %s13
      %s16 = sshll.u32 [#allocation2], 4
      %s17 = int_to_ptr.vmem [resolvable:$true] %s16
      %19 = dma.hbm_to_vmem [thread:$0]  %s0, 32, %s17, [#allocation3]
    $region5: #{qnet_forward_packed.1} parent=1 // pred_fallthru
      _
    // Predicated region
    $region6: #{qnet_forward_packed.1} parent=1 // pred_check
      _
    $region7: #{qnet_forward_packed.1} parent=1 // pred_check_branch
      %21 = sbr.rel (0) target = $region9
    $region8: #{qnet_forward_packed.1} parent=1 // pred_region
      %s23 = ssub.s32 1152, 1152
      %24 = vsyncadd [#allocation6], %s23
      %s25 = sshll.u32 [#allocation5], 4
      %s26 = int_to_ptr.vmem [resolvable:$true] %s25
      %31 = dma.hbm_to_vmem [thread:$0]  %s1, 1152, %s26, [#allocation6], 64, 64, 4
    $region9: #{qnet_forward_packed.1} parent=1 // pred_fallthru
      _
    // Predicated region
    $region10: #{qnet_forward_packed.1} parent=1 // pred_check
      _
    $region11: #{qnet_forward_packed.1} parent=1 // pred_check_branch
      %33 = sbr.rel (0) target = $region13
    $region12: #{qnet_forward_packed.1} parent=1 // pred_region
      %34 = dma.done [#allocation3], 32
    $region13: #{qnet_forward_packed.1} parent=1 // pred_fallthru
      _
    // Predicated region
    $region14: #{qnet_forward_packed.1} parent=1 // pred_check
      _
    $region15: #{qnet_forward_packed.1} parent=1 // pred_check_branch
      %36 = sbr.rel (0) target = $region17
    $region16: #{qnet_forward_packed.1} parent=1 // pred_region
      %37 = dma.done [#allocation6], 1152
    $region17: #{qnet_forward_packed.1} parent=1 // pred_fallthru
      _
    %v39 = vld [vmem:[#allocation2] sm:$0x3]
    %v40 = vpack.c.bf16 %v39, %v39
    %v41 = vld [vmem:[#allocation5 + $0x40] sm:$0xf]
    %v42 = vunpack.c.l.bf16 %v41
    %v43 = vld [vmem:[#allocation5] sm:$0xf]
    %vm44 = vcmask 64512
    %v46 = vsel %vm44, %v40, 0
    %vm48 = vcmask 1043456
    %v50 = vsel %vm48, %v43, 0
    %52 = vmatprep.subr.bf16.mxu0 0
    %53 = vmatpush1.bf16.msra.mxu0 %v50
    %54 = vmatprep.subr.bf16.mxu0 0
    %55 = vmatpush1.bf16.msra.mxu0 0
    %56 = vmatprep.subr.bf16.mxu0 0
    %57 = vmatpush1.bf16.msra.mxu0 0
    %58 = vmatprep.subr.bf16.mxu0 0
    %59 = vmatpush1.bf16.msra.mxu0 0
    %60 = vmatprep.subr.bf16.mxu0 0
    %61 = vmatpush1.bf16.msra.mxu0 0
    %62 = vmatprep.subr.bf16.mxu0 0
    %63 = vmatpush1.bf16.msra.mxu0 0
    %64 = vmatprep.subr.bf16.mxu0 0
    %65 = vmatpush1.bf16.msra.mxu0 0
    %66 = vmatprep.subr.bf16.mxu0 0
    %67 = vmatpush1.bf16.msra.mxu0 0
    %68 = vmatprep.subr.bf16.mxu0 0
    %69 = vmatpush1.bf16.msra.mxu0 0
    %70 = vmatprep.subr.bf16.mxu0 0
    %71 = vmatpush1.bf16.msra.mxu0 0
    %72 = vmatprep.subr.bf16.mxu0 0
    %73 = vmatpush1.bf16.msra.mxu0 0
    %74 = vmatprep.subr.bf16.mxu0 0
    %75 = vmatpush1.bf16.msra.mxu0 0
    %76 = vmatprep.subr.bf16.mxu0 0
    %77 = vmatpush1.bf16.msra.mxu0 0
    %78 = vmatprep.subr.bf16.mxu0 0
    %79 = vmatpush1.bf16.msra.mxu0 0
    %80 = vmatprep.subr.bf16.mxu0 0
    %81 = vmatpush1.bf16.msra.mxu0 0
    %82 = vmatprep.subr.bf16.mxu0 0
    %83 = vmatpush1.bf16.msra.mxu0 0
    %84 = vmatprep.mubr.bf16.mxu0 0
    %85 = vmatmul.mubr.bf16.gmra.mrb[0].mxu0 %v46
    %v86 = vpop.f32.mrb[0].mxu0
    %v87 = vadd.f32 0.0, %v86
    %v88 = vpop.f32.mrb[0].mxu0
    %v89 = vpop.f32.mrb[0].mxu0
    %v90 = vpop.f32.mrb[0].mxu0
    %91 = vdwg.mxu0
    %v92 = vlaneseq
    %v93 = vshrl.u32 %v92, 7
    %v94 = vsub.s32 0, %v93
    %v95 = vrot.slane %v42, %v94
    %v96 = vadd.f32 %v87, %v95
    %v97 = vmax.f32 %v96, 0.0
    %v98 = vpack.c.bf16 %v97, %v97
    %v99 = vld [vmem:[#allocation5 + $0x8] sm:$0xf]
    %v100 = vld [vmem:[#allocation5 + $0xc] sm:$0xf]
    %v101 = vld [vmem:[#allocation5 + $0x10] sm:$0xf]
    %v102 = vld [vmem:[#allocation5 + $0x14] sm:$0xf]
    %v103 = vld [vmem:[#allocation5 + $0x18] sm:$0xf]
    %v104 = vld [vmem:[#allocation5 + $0x1c] sm:$0xf]
    %v105 = vld [vmem:[#allocation5 + $0x20] sm:$0xf]
    %v106 = vld [vmem:[#allocation5 + $0x24] sm:$0xf]
    %v115 = vunpack.c.l.b16 %v99
    %v116 = vunpack.c.l.b16 %v100
    %v117 = vunpack.c.l.b16 %v101
    %v118 = vunpack.c.l.b16 %v102
    %v119 = vunpack.c.l.b16 %v103
    %v120 = vunpack.c.l.b16 %v104
    %v121 = vunpack.c.l.b16 %v105
    %v122 = vunpack.c.l.b16 %v106
    %v123 = vpack.c.b16 %v116, %v115
    %v124 = vpack.c.b16 %v118, %v117
    %v125 = vpack.c.b16 %v120, %v119
    %v126 = vpack.c.b16 %v122, %v121
    %vm131 = vcmask 523264
    %v133 = vsel %vm131, %v98, 0
    %135 = vmatprep.subr.bf16.mxu0 0
    %136 = vmatpush1.bf16.msra.mxu0 %v123
    %137 = vmatprep.subr.bf16.mxu0 0
    %138 = vmatpush1.bf16.msra.mxu0 %v124
    %139 = vmatprep.subr.bf16.mxu0 0
    %140 = vmatpush1.bf16.msra.mxu0 %v125
    %141 = vmatprep.subr.bf16.mxu0 0
    %142 = vmatpush1.bf16.msra.mxu0 %v126
    %143 = vmatprep.subr.bf16.mxu0 0
    %144 = vmatpush1.bf16.msra.mxu0 0
    %145 = vmatprep.subr.bf16.mxu0 0
    %146 = vmatpush1.bf16.msra.mxu0 0
    %147 = vmatprep.subr.bf16.mxu0 0
    %148 = vmatpush1.bf16.msra.mxu0 0
    %149 = vmatprep.subr.bf16.mxu0 0
    %150 = vmatpush1.bf16.msra.mxu0 0
    %151 = vmatprep.subr.bf16.mxu0 0
    %152 = vmatpush1.bf16.msra.mxu0 0
    %153 = vmatprep.subr.bf16.mxu0 0
    %154 = vmatpush1.bf16.msra.mxu0 0
    %155 = vmatprep.subr.bf16.mxu0 0
    %156 = vmatpush1.bf16.msra.mxu0 0
    %157 = vmatprep.subr.bf16.mxu0 0
    %158 = vmatpush1.bf16.msra.mxu0 0
    %159 = vmatprep.subr.bf16.mxu0 0
    %160 = vmatpush1.bf16.msra.mxu0 0
    %161 = vmatprep.subr.bf16.mxu0 0
    %162 = vmatpush1.bf16.msra.mxu0 0
    %163 = vmatprep.subr.bf16.mxu0 0
    %164 = vmatpush1.bf16.msra.mxu0 0
    %165 = vmatprep.subr.bf16.mxu0 0
    %166 = vmatpush1.bf16.msra.mxu0 0
    %167 = vmatprep.mubr.bf16.mxu0 0
    %168 = vmatmul.mubr.bf16.gmra.mrb[0].mxu0 %v133
    %v169 = vpop.f32.mrb[0].mxu0
    %v170 = vadd.f32 0.0, %v169
    %v171 = vpop.f32.mrb[0].mxu0
    %v172 = vpop.f32.mrb[0].mxu0
    %v173 = vpop.f32.mrb[0].mxu0
    %174 = vdwg.mxu0
    %v175 = vlaneseq
    %v176 = vshrl.u32 %v175, 7
    %v177 = vsub.s32 1, %v176
    %v178 = vrot.slane %v42, %v177
    %v179 = vadd.f32 %v170, %v178
    %v180 = vmax.f32 %v179, 0.0
    %v181 = vpack.c.bf16 %v180, %v180
    %v182 = vld [vmem:[#allocation5 + $0x28] sm:$0xf]
    %v183 = vld [vmem:[#allocation5 + $0x2c] sm:$0xf]
    %v184 = vld [vmem:[#allocation5 + $0x30] sm:$0xf]
    %v185 = vld [vmem:[#allocation5 + $0x34] sm:$0xf]
    %v190 = vunpack.c.l.b16 %v182
    %v191 = vunpack.c.l.b16 %v183
    %v192 = vunpack.c.l.b16 %v184
    %v193 = vunpack.c.l.b16 %v185
    %v194 = vpack.c.b16 %v191, %v190
    %v195 = vpack.c.b16 %v193, %v192
    %vm198 = vcmask 261120
    %v200 = vsel %vm198, %v181, 0
    %202 = vmatprep.subr.bf16.mxu0 0
    %203 = vmatpush1.bf16.msra.mxu0 %v194
    %204 = vmatprep.subr.bf16.mxu0 0
    %205 = vmatpush1.bf16.msra.mxu0 %v195
    %206 = vmatprep.subr.bf16.mxu0 0
    %207 = vmatpush1.bf16.msra.mxu0 0
    %208 = vmatprep.subr.bf16.mxu0 0
    %209 = vmatpush1.bf16.msra.mxu0 0
    %210 = vmatprep.subr.bf16.mxu0 0
    %211 = vmatpush1.bf16.msra.mxu0 0
    %212 = vmatprep.subr.bf16.mxu0 0
    %213 = vmatpush1.bf16.msra.mxu0 0
    %214 = vmatprep.subr.bf16.mxu0 0
    %215 = vmatpush1.bf16.msra.mxu0 0
    %216 = vmatprep.subr.bf16.mxu0 0
    %217 = vmatpush1.bf16.msra.mxu0 0
    %218 = vmatprep.subr.bf16.mxu0 0
    %219 = vmatpush1.bf16.msra.mxu0 0
    %220 = vmatprep.subr.bf16.mxu0 0
    %221 = vmatpush1.bf16.msra.mxu0 0
    %222 = vmatprep.subr.bf16.mxu0 0
    %223 = vmatpush1.bf16.msra.mxu0 0
    %224 = vmatprep.subr.bf16.mxu0 0
    %225 = vmatpush1.bf16.msra.mxu0 0
    %226 = vmatprep.subr.bf16.mxu0 0
    %227 = vmatpush1.bf16.msra.mxu0 0
    %228 = vmatprep.subr.bf16.mxu0 0
    %229 = vmatpush1.bf16.msra.mxu0 0
    %230 = vmatprep.subr.bf16.mxu0 0
    %231 = vmatpush1.bf16.msra.mxu0 0
    %232 = vmatprep.subr.bf16.mxu0 0
    %233 = vmatpush1.bf16.msra.mxu0 0
    %234 = vmatprep.mubr.bf16.mxu0 0
    %235 = vmatmul.mubr.bf16.gmra.mrb[0].mxu0 %v200
    %v236 = vpop.f32.mrb[0].mxu0
    %v237 = vadd.f32 0.0, %v236
    %v238 = vpop.f32.mrb[0].mxu0
    %v239 = vpop.f32.mrb[0].mxu0
    %v240 = vpop.f32.mrb[0].mxu0
    %241 = vdwg.mxu0
    %v242 = vlaneseq
    %v243 = vshrl.u32 %v242, 7
    %v244 = vsub.s32 2, %v243
    %v245 = vrot.slane %v42, %v244
    %v246 = vadd.f32 %v237, %v245
    %v247 = vmax.f32 %v246, 0.0
    %v248 = vpack.c.bf16 %v247, %v247
    %v249 = vld [vmem:[#allocation5 + $0x38] sm:$0xf]
    %v250 = vld [vmem:[#allocation5 + $0x3c] sm:$0xf]
    %v251 = vlaneseq
    %v252 = vshrl.u32 %v251, 7
    %v253 = vsub.s32 3, %v252
    %v254 = vrot.slane %v42, %v253
    %v257 = vunpack.c.l.b16 %v249
    %v258 = vunpack.c.l.b16 %v250
    %v259 = vpack.c.b16 %v258, %v257
    %vm261 = vcmask 130048
    %v263 = vsel %vm261, %v248, 0
    %265 = vmatprep.subr.bf16.mxu0 0
    %266 = vmatpush1.bf16.msra.mxu0 %v259
    %267 = vmatprep.subr.bf16.mxu0 0
    %268 = vmatpush1.bf16.msra.mxu0 0
    %269 = vmatprep.subr.bf16.mxu0 0
    %270 = vmatpush1.bf16.msra.mxu0 0
    %271 = vmatprep.subr.bf16.mxu0 0
    %272 = vmatpush1.bf16.msra.mxu0 0
    %273 = vmatprep.subr.bf16.mxu0 0
    %274 = vmatpush1.bf16.msra.mxu0 0
    %275 = vmatprep.subr.bf16.mxu0 0
    %276 = vmatpush1.bf16.msra.mxu0 0
    %277 = vmatprep.subr.bf16.mxu0 0
    %278 = vmatpush1.bf16.msra.mxu0 0
    %279 = vmatprep.subr.bf16.mxu0 0
    %280 = vmatpush1.bf16.msra.mxu0 0
    %281 = vmatprep.subr.bf16.mxu0 0
    %282 = vmatpush1.bf16.msra.mxu0 0
    %283 = vmatprep.subr.bf16.mxu0 0
    %284 = vmatpush1.bf16.msra.mxu0 0
    %285 = vmatprep.subr.bf16.mxu0 0
    %286 = vmatpush1.bf16.msra.mxu0 0
    %287 = vmatprep.subr.bf16.mxu0 0
    %288 = vmatpush1.bf16.msra.mxu0 0
    %289 = vmatprep.subr.bf16.mxu0 0
    %290 = vmatpush1.bf16.msra.mxu0 0
    %291 = vmatprep.subr.bf16.mxu0 0
    %292 = vmatpush1.bf16.msra.mxu0 0
    %293 = vmatprep.subr.bf16.mxu0 0
    %294 = vmatpush1.bf16.msra.mxu0 0
    %295 = vmatprep.subr.bf16.mxu0 0
    %296 = vmatpush1.bf16.msra.mxu0 0
    %297 = vmatprep.mubr.bf16.mxu0 0
    %298 = vmatmul.mubr.bf16.gmra.mrb[0].mxu0 %v263
    %v299 = vpop.f32.mrb[0].mxu0
    %v300 = vadd.f32 %v254, %v299
    %v301 = vpop.f32.mrb[0].mxu0
    %v302 = vpop.f32.mrb[0].mxu0
    %v303 = vpop.f32.mrb[0].mxu0
    %304 = vdwg.mxu0
    %v305 = vpack.c.bf16 %v300, %v300
    %306 = vst [vmem:[#allocation7] sm:$0x1] %v305
    // Predicated region
    $region18: #{qnet_forward_packed.1} parent=1 // pred_check
      _
    $region19: #{qnet_forward_packed.1} parent=1 // pred_check_branch
      %308 = sbr.rel (0) target = $region21
    $region20: #{qnet_forward_packed.1} parent=1 // pred_region
      %s310 = ssub.s32 16, 16
      %311 = vsyncadd [#allocation4], %s310
      %s313 = sshll.u32 [#allocation7], 4
      %s314 = int_to_ptr.vmem [resolvable:$true] %s313
      %316 = dma.vmem_to_hbm [thread:$0]  %s314, 16, %s2, [#allocation4]
    $region21: #{qnet_forward_packed.1} parent=1 // pred_fallthru
      _
    // Predicated region
    $region22: #{qnet_forward_packed.1} parent=1 // pred_check
      _
    $region23: #{qnet_forward_packed.1} parent=1 // pred_check_branch
      %318 = sbr.rel (0) target = $region25
    $region24: #{qnet_forward_packed.1} parent=1 // pred_region
      %319 = dma.done [#allocation4], 16
    $region25: #{qnet_forward_packed.1} parent=1 // pred_fallthru
      _
    %320 = vsyncpa [#allocation3], 1
    %321 = vsyncpa [#allocation6], 1
    %322 = vsyncpa [#allocation4], 1

</llo_original>
